<compile_context>
chip_gen: v7x
topology: tpu7x:2x2x1
jax: 0.10.0
libtpu: 0.0.40
codegen_flags: <defaults>
</compile_context>

<pallas_src>
import jax
import jax.numpy as jnp
from jax.experimental import pallas as pl
from jax.experimental.pallas import tpu as pltpu

_EPS = 1e-12  # F.normalize default

# Flipped to False (and cached) if this Pallas build rejects pl.Buffered(1).
_RESIDENT_SINGLE_BUFFER_OK = True


def _round_up(n, m):
    return ((n + m - 1) // m) * m


def _vmem_budget_bytes():
    """Usable scoped-VMEM budget for this chip generation (with headroom)."""
    cap = 64 << 20  # conservative fallback (safe on every generation)
    try:
        cap = int(pltpu.get_tpu_info().vmem_capacity_bytes)
    except Exception:
        pass
    return max(cap - (16 << 20), (cap * 3) // 4)


# ----------------------------------------------------------------------------------
# Kernels
# ----------------------------------------------------------------------------------
def _linear_normalize_kernel(x_ref, w_ref, b_ref, o_ref):
    """Fused linear + row L2-normalize; full (F, C_pad) weight resident in VMEM."""
    # Cast x to the weight dtype in VMEM (bf16 MXU fast path; no-op for f32 weights).
    xv = x_ref[...].astype(w_ref.dtype)
    y = jnp.dot(xv, w_ref[...], preferred_element_type=jnp.float32)
    y = y + b_ref[...]  # bias broadcast over batch rows, f32

    # y / max(||y||, eps)  ==  y * rsqrt(max(sumsq, eps^2))   (rsqrt -> EUP slot)
    sumsq = jnp.sum(y * y, axis=1, keepdims=True)
    inv = jax.lax.rsqrt(jnp.maximum(sumsq, _EPS * _EPS))
    o_ref[...] = (y * inv).astype(o_ref.dtype)


def _linear_normalize_ctiled_kernel(x_ref, w_ref, b_ref, o_ref, acc_ref):
    """Class-tiled fallback: accumulate the (tile_m, C_pad) row slab across C tiles
    in an f32 scratch; normalize + store on the last C step."""
    j = pl.program_id(1)
    tn = w_ref.shape[1]

    xv = x_ref[...].astype(w_ref.dtype)
    y = jnp.dot(xv, w_ref[...], preferred_element_type=jnp.float32) + b_ref[...]

    col = pl.multiple_of(j * tn, 128)
    acc_ref[:, pl.ds(col, tn)] = y

    @pl.when(j == pl.num_programs(1) - 1)
    def _():
        full = acc_ref[...]
        sumsq = jnp.sum(full * full, axis=1, keepdims=True)
        inv = jax.lax.rsqrt(jnp.maximum(sumsq, _EPS * _EPS))
        o_ref[...] = (full * inv).astype(o_ref.dtype)


# ----------------------------------------------------------------------------------
# Parameter preparation (do ONCE, reuse across calls)
# ----------------------------------------------------------------------------------
def prepare_params(w, b, *, matmul_dtype=jnp.bfloat16):
    """Pad nn.Linear params once.

    w: [feat_dim, num_classes]  (i.e. torch weight.T), b: [num_classes].
    Returns (w_p [F, C_pad], b_p [1, C_pad] f32, num_classes) with C_pad a multiple
    of 128 (lane-dense, unmasked vst) and padded columns exactly zero (so they do
    not change row norms). matmul_dtype=None keeps the original weight dtype.
    """
    F, C = w.shape
    C_pad = _round_up(max(C, 128), 128)
    w_dtype = w.dtype if matmul_dtype is None else matmul_dtype
    w_p = jnp.zeros((F, C_pad), w_dtype).at[:, :C].set(w.astype(w_dtype))
    b_p = jnp.zeros((1, C_pad), jnp.float32).at[0, :C].set(b.astype(jnp.float32))
    return w_p, b_p, C


# ----------------------------------------------------------------------------------
# Call paths
# ----------------------------------------------------------------------------------
def _run_fused(x, w_p, b_p, out_dtype, tile_m, budget, big_vmem):
    B, F = x.shape
    C_pad = w_p.shape[1]
    x_item = x.dtype.itemsize
    w_item = w_p.dtype.itemsize
    out_item = jnp.dtype(out_dtype).itemsize
    w_bytes = F * C_pad * w_item

    # --- batch tile: bigger on 128-MiB-VMEM chips, >=2 steps for v7x's 2 TCs ---
    if tile_m is None:
        cap = 1024 if big_vmem else 512
        if B <= cap:
            tile_m = B  # single tile (block == full dim is always legal)
            if (not big_vmem) and B >= 16 and B % 2 == 0:
                half = _round_up(B // 2, 8)
                if half < B:
                    tile_m = half  # give each TensorCore a batch tile
        else:
            tile_m = cap
    if tile_m != B and tile_m % 8 != 0:
        tile_m = _round_up(tile_m, 8)

    # --- VMEM estimate incl. the f32 (tile_m, C_pad) intermediate; shrink to fit ---
    def est(tm, w_bufs=2):
        return (2 * tm * F * x_item          # streaming x (double-buffered)
                + 2 * tm * C_pad * out_item  # streaming output
                + w_bufs * w_bytes           # resident weight
                + 2 * C_pad * 4              # resident bias
                + 2 * tm * C_pad * 4)        # f32 matmul result + elementwise temps

    while tile_m > 8 and est(tile_m) > budget:
        tile_m = max(8, _round_up(tile_m // 2, 8))

    vmem_limit = int(min(max(est(tile_m) * 5 // 4, 4 << 20), budget))
    grid_m = pl.cdiv(B, tile_m)  # ragged last tile OK: rows past B are discarded

    def build(single_buffer_resident):
        if single_buffer_resident:
            # Constant index_map -> no need to double-buffer the resident W / bias.
            w_spec = pl.BlockSpec((F, C_pad), lambda i: (0, 0),
                                  pipeline_mode=pl.Buffered(1))
            b_spec = pl.BlockSpec((1, C_pad), lambda i: (0, 0),
                                  pipeline_mode=pl.Buffered(1))
        else:
            w_spec = pl.BlockSpec((F, C_pad), lambda i: (0, 0))
            b_spec = pl.BlockSpec((1, C_pad), lambda i: (0, 0))
        return pl.pallas_call(
            _linear_normalize_kernel,
            out_shape=jax.ShapeDtypeStruct((B, C_pad), out_dtype),
            grid=(grid_m,),
            in_specs=[
                pl.BlockSpec((tile_m, F), lambda i: (i, 0)),  # x walks the batch
                w_spec,
                b_spec,
            ],
            out_specs=pl.BlockSpec((tile_m, C_pad), lambda i: (i, 0)),
            compiler_params=pltpu.CompilerParams(
                dimension_semantics=("parallel",),
                vmem_limit_bytes=vmem_limit,
            ),
        )

    global _RESIDENT_SINGLE_BUFFER_OK
    if _RESIDENT_SINGLE_BUFFER_OK:
        try:
            return build(True)(x, w_p, b_p)
        except Exception:
            _RESIDENT_SINGLE_BUFFER_OK = False  # fall back to default double buffering
    return build(False)(x, w_p, b_p)


def _run_class_tiled(x, w_p, b_p, out_dtype, tile_m, tile_c, budget):
    B, F = x.shape
    C_pad = w_p.shape[1]
    x_item = x.dtype.itemsize
    w_item = w_p.dtype.itemsize
    out_item = jnp.dtype(out_dtype).itemsize

    if tile_c is None:
        tile_c = 128
        for cand in (2048, 1024, 512, 256, 128):
            if cand <= C_pad and C_pad % cand == 0:
                tile_c = cand
                break
    if tile_m is None:
        tile_m = B if B <= 256 else 256
    if tile_m != B and tile_m % 8 != 0:
        tile_m = _round_up(tile_m, 8)

    def est(tm, tc):
        return (2 * tm * F * x_item          # x tile (resident across C steps)
                + 2 * F * tc * w_item        # streaming W column blocks
                + 4 * tc * 4                 # streaming bias blocks
                + tm * C_pad * 4             # f32 accumulator scratch
                + 2 * tm * C_pad * out_item  # resident output slab
                + 2 * tm * tc * 4)           # per-step f32 chunk + temps

    while tile_m > 8 and est(tile_m, tile_c) > budget:
        tile_m = max(8, _round_up(tile_m // 2, 8))
    while tile_c > 128 and est(tile_m, tile_c) > budget and C_pad % (tile_c // 2) == 0:
        tile_c //= 2

    vmem_limit = int(min(max(est(tile_m, tile_c) * 5 // 4, 4 << 20), budget))
    grid = (pl.cdiv(B, tile_m), C_pad // tile_c)

    return pl.pallas_call(
        _linear_normalize_ctiled_kernel,
        out_shape=jax.ShapeDtypeStruct((B, C_pad), out_dtype),
        grid=grid,
        in_specs=[
            pl.BlockSpec((tile_m, F), lambda i, j: (i, 0)),   # x resident across C steps
            pl.BlockSpec((F, tile_c), lambda i, j: (0, j)),   # W streams over classes
            pl.BlockSpec((1, tile_c), lambda i, j: (0, j)),
        ],
        out_specs=pl.BlockSpec((tile_m, C_pad), lambda i, j: (i, 0)),
        scratch_shapes=[pltpu.VMEM((tile_m, C_pad), jnp.float32)],
        compiler_params=pltpu.CompilerParams(
            dimension_semantics=("parallel", "arbitrary"),
            vmem_limit_bytes=vmem_limit,
        ),
    )(x, w_p, b_p)


def linear_classifier_prepared(x, w_p, b_p, num_classes, *, out_dtype=jnp.float32,
                               tile_m=None, tile_c=None, force_class_tiled=False):
    """x: [B, F] with params from prepare_params() -> [B, num_classes] L2-normalized.

    out_dtype=jnp.bfloat16 halves output HBM writeback (normalized rows are in [-1,1]).
    Dispatches to a class-tiled kernel when the (F, C_pad) weight cannot stay VMEM
    resident (or when force_class_tiled=True).
    """
    B, F = x.shape
    Fw, C_pad = w_p.shape
    assert Fw == F, "x feature dim must match prepared weight"

    budget = _vmem_budget_bytes()
    big_vmem = budget > (64 << 20)

    # Can the resident-weight path fit even at the smallest batch tile?
    x_item = x.dtype.itemsize
    w_item = w_p.dtype.itemsize
    out_item = jnp.dtype(out_dtype).itemsize
    min_fused = (2 * 8 * F * x_item + 2 * 8 * C_pad * out_item
                 + 2 * F * C_pad * w_item + 2 * C_pad * 4 + 2 * 8 * C_pad * 4)
    use_ctiled = force_class_tiled or (min_fused > budget)

    if use_ctiled:
        out = _run_class_tiled(x, w_p, b_p, out_dtype, tile_m, tile_c, budget)
    else:
        out = _run_fused(x, w_p, b_p, out_dtype, tile_m, budget, big_vmem)

    return out if num_classes == C_pad else out[:, :num_classes]


def linear_classifier(x, w, b, *, matmul_dtype=jnp.bfloat16, **kwargs):
    """One-shot convenience wrapper (prefer prepare_params + linear_classifier_prepared
    when the head is called repeatedly, to avoid re-padding W/b every call)."""
    w_p, b_p, num_classes = prepare_params(w, b, matmul_dtype=matmul_dtype)
    return linear_classifier_prepared(x, w_p, b_p, num_classes, **kwargs)


def reference(x, w, b):
    y = x @ w + b
    n = jnp.maximum(jnp.sqrt(jnp.sum(y * y, axis=1, keepdims=True)), _EPS)
    return y / n


if __name__ == "__main__":
    # Small shapes consistent with the module: batch=8, feat_dim=32, num_classes=10.
    B, FEAT, NUM_CLASSES = 8, 32, 10

    key = jax.random.PRNGKey(0)
    kx, kw, kb, kx2, kw2, kb2 = jax.random.split(key, 6)

    x = jax.random.normal(kx, (B, FEAT), dtype=jnp.float32)
    bound = 1.0 / (FEAT ** 0.5)
    w = jax.random.uniform(kw, (FEAT, NUM_CLASSES), minval=-bound, maxval=bound,
                           dtype=jnp.float32)
    b = jax.random.uniform(kb, (NUM_CLASSES,), minval=-bound, maxval=bound,
                           dtype=jnp.float32)

    ref = reference(x, w, b)

    # 1) Exact f32 path — params prepared once, reused across calls.
    w_f32, b_p, C = prepare_params(w, b, matmul_dtype=None)
    out = linear_classifier_prepared(x, w_f32, b_p, C)
    jax.block_until_ready(out)
    assert out.shape == (B, NUM_CLASSES)
    assert jnp.allclose(out, ref, atol=1e-5, rtol=1e-5)

    # 2) Default bf16 MXU fast path (all generations) — looser tolerance.
    w_bf, b_pbf, C = prepare_params(w, b)  # bf16 weights by default
    out_bf = linear_classifier_prepared(x, w_bf, b_pbf, C)
    jax.block_until_ready(out_bf)
    assert jnp.allclose(out_bf, ref, atol=3e-2, rtol=3e-2)

    # 2b) bf16 output option (halves output writeback).
    out_bf_o = linear_classifier_prepared(x, w_bf, b_pbf, C, out_dtype=jnp.bfloat16)
    jax.block_until_ready(out_bf_o)
    assert jnp.allclose(out_bf_o.astype(jnp.float32), ref, atol=5e-2, rtol=5e-2)

    # 3) Class-tiled fallback (forced at small scale to exercise the large-C path).
    B2, F2, C2 = 16, 64, 300
    x2 = jax.random.normal(kx2, (B2, F2), dtype=jnp.float32)
    w2 = jax.random.normal(kw2, (F2, C2), dtype=jnp.float32) * 0.1
    b2 = jax.random.normal(kb2, (C2,), dtype=jnp.float32) * 0.1
    w2p, b2p, _ = prepare_params(w2, b2, matmul_dtype=None)
    out2 = linear_classifier_prepared(x2, w2p, b2p, C2,
                                      force_class_tiled=True, tile_c=128)
    jax.block_until_ready(out2)
    ref2 = reference(x2, w2, b2)
    assert out2.shape == (B2, C2)
    assert jnp.allclose(out2, ref2, atol=1e-5, rtol=1e-5)

    print("KERNEL_OK")
</pallas_src>

<mosaic_0001>
module attributes {stable_mosaic.version = 11 : i64} {
  func.func @_linear_normalize_kernel(%arg0: i32, %arg1: memref<8x32xf32, #tpu.memory_space<vmem>>, %arg2: memref<32x128xf32, #tpu.memory_space<vmem>>, %arg3: memref<1x128xf32, #tpu.memory_space<vmem>>, %arg4: memref<8x128xf32, #tpu.memory_space<vmem>>) attributes {dimension_semantics = [#tpu.dimension_semantics<parallel>], iteration_bounds = array<i64: 1>, scalar_prefetch = 0 : i64, scratch_operands = 0 : i64, tpu.core_type = #tpu.core_type<tc>, window_params = [{transform_indices = @transform_0, window_bounds = array<i64: 8, 32>}, {pipeline_mode = #tpu.pipeline_mode<synchronous>, transform_indices = @transform_1, window_bounds = array<i64: 32, 128>}, {pipeline_mode = #tpu.pipeline_mode<synchronous>, transform_indices = @transform_2, window_bounds = array<i64: 1, 128>}, {transform_indices = @transform_3, window_bounds = array<i64: 8, 128>}]} {
    %c0 = arith.constant 0 : index
    %c0_0 = arith.constant 0 : index
    %0 = vector.load %arg1[%c0, %c0_0] : memref<8x32xf32, #tpu.memory_space<vmem>>, vector<8x32xf32>
    %c0_1 = arith.constant 0 : index
    %c0_2 = arith.constant 0 : index
    %1 = vector.load %arg2[%c0_1, %c0_2] : memref<32x128xf32, #tpu.memory_space<vmem>>, vector<32x128xf32>
    %cst = arith.constant dense<0.000000e+00> : vector<8x128xf32>
    %2 = tpu.matmul %0, %1, %cst {dimension_numbers = #tpu.dot_dimension_numbers<[1], [0], [0], [1], [0, 0, 1, 1], [], []>} : vector<8x32xf32>, vector<32x128xf32>, vector<8x128xf32> -> vector<8x128xf32>
    %c0_3 = arith.constant 0 : index
    %c0_4 = arith.constant 0 : index
    %3 = vector.load %arg3[%c0_3, %c0_4] : memref<1x128xf32, #tpu.memory_space<vmem>>, vector<1x128xf32>
    %4 = vector.broadcast %3 : vector<1x128xf32> to vector<8x128xf32>
    %5 = arith.addf %2, %4 : vector<8x128xf32>
    %6 = arith.mulf %5, %5 : vector<8x128xf32>
    %cst_5 = arith.constant dense<0.000000e+00> : vector<8xf32>
    %7 = vector.multi_reduction <add>, %6, %cst_5 [1] : vector<8x128xf32> to vector<8xf32>
    %8 = vector.shape_cast %7 : vector<8xf32> to vector<8x1xf32>
    %cst_6 = arith.constant 1.000000e-24 : f32
    %9 = vector.broadcast %cst_6 : f32 to vector<8x1xf32>
    %10 = arith.maximumf %8, %9 : vector<8x1xf32>
    %11 = math.rsqrt %10 : vector<8x1xf32>
    %12 = vector.broadcast %11 : vector<8x1xf32> to vector<8x128xf32>
    %13 = arith.mulf %5, %12 : vector<8x128xf32>
    %c0_7 = arith.constant 0 : index
    %c0_8 = arith.constant 0 : index
    %14 = vector.load %arg4[%c0_7, %c0_8] : memref<8x128xf32, #tpu.memory_space<vmem>>, vector<8x128xf32>
    tpu.vector_store %arg4[%c0_7, %c0_8], %13 {strides = array<i32>} : memref<8x128xf32, #tpu.memory_space<vmem>>, vector<8x128xf32>,
    return
  }
  func.func @transform_0(%arg0: i32) -> (i32, i32) {
    %c0_i32 = arith.constant 0 : i32
    %c0_i32_0 = arith.constant 0 : i32
    return %arg0, %c0_i32 : i32, i32
  }
  func.func @transform_1(%arg0: i32) -> (i32, i32) {
    %c0_i32 = arith.constant 0 : i32
    %c0_i32_0 = arith.constant 0 : i32
    %c0_i32_1 = arith.constant 0 : i32
    return %c0_i32, %c0_i32_0 : i32, i32
  }
  func.func @transform_2(%arg0: i32) -> (i32, i32) {
    %c0_i32 = arith.constant 0 : i32
    %c0_i32_0 = arith.constant 0 : i32
    %c0_i32_1 = arith.constant 0 : i32
    return %c0_i32, %c0_i32_0 : i32, i32
  }
  func.func @transform_3(%arg0: i32) -> (i32, i32) {
    %c0_i32 = arith.constant 0 : i32
    %c0_i32_0 = arith.constant 0 : i32
    return %arg0, %c0_i32 : i32, i32
  }
}

module attributes {stable_mosaic.version = 11 : i64} {
  func.func @_linear_normalize_kernel(%arg0: i32, %arg1: memref<8x32xf32, #tpu.memory_space<vmem>>, %arg2: memref<32x128xf32, #tpu.memory_space<vmem>>, %arg3: memref<1x128xf32, #tpu.memory_space<vmem>>, %arg4: memref<8x128xf32, #tpu.memory_space<vmem>>) attributes {dimension_semantics = [#tpu.dimension_semantics<parallel>], iteration_bounds = array<i64: 1>, scalar_prefetch = 0 : i64, scratch_operands = 0 : i64, tpu.core_type = #tpu.core_type<tc>, window_params = [{transform_indices = @transform_0, window_bounds = array<i64: 8, 32>}, {pipeline_mode = #tpu.pipeline_mode<synchronous>, transform_indices = @transform_1, window_bounds = array<i64: 32, 128>}, {pipeline_mode = #tpu.pipeline_mode<synchronous>, transform_indices = @transform_2, window_bounds = array<i64: 1, 128>}, {transform_indices = @transform_3, window_bounds = array<i64: 8, 128>}]} {
    %c0 = arith.constant 0 : index
    %c0_0 = arith.constant 0 : index
    %0 = vector.load %arg1[%c0, %c0_0] : memref<8x32xf32, #tpu.memory_space<vmem>>, vector<8x32xf32>
    %c0_1 = arith.constant 0 : index
    %c0_2 = arith.constant 0 : index
    %1 = vector.load %arg2[%c0_1, %c0_2] : memref<32x128xf32, #tpu.memory_space<vmem>>, vector<32x128xf32>
    %cst = arith.constant dense<0.000000e+00> : vector<8x128xf32>
    %2 = tpu.matmul %0, %1, %cst {dimension_numbers = #tpu.dot_dimension_numbers<[1], [0], [0], [1], [0, 0, 1, 1], [], []>} : vector<8x32xf32>, vector<32x128xf32>, vector<8x128xf32> -> vector<8x128xf32>
    %c0_3 = arith.constant 0 : index
    %c0_4 = arith.constant 0 : index
    %3 = vector.load %arg3[%c0_3, %c0_4] : memref<1x128xf32, #tpu.memory_space<vmem>>, vector<1x128xf32>
    %4 = vector.broadcast %3 : vector<1x128xf32> to vector<8x128xf32>
    %5 = arith.addf %2, %4 : vector<8x128xf32>
    %6 = arith.mulf %5, %5 : vector<8x128xf32>
    %cst_5 = arith.constant dense<0.000000e+00> : vector<8xf32>
    %7 = vector.multi_reduction <add>, %6, %cst_5 [1] : vector<8x128xf32> to vector<8xf32>
    %8 = vector.shape_cast %7 : vector<8xf32> to vector<8x1xf32>
    %cst_6 = arith.constant 1.000000e-24 : f32
    %9 = vector.broadcast %cst_6 : f32 to vector<8x1xf32>
    %10 = arith.maximumf %8, %9 : vector<8x1xf32>
    %11 = math.rsqrt %10 : vector<8x1xf32>
    %12 = vector.broadcast %11 : vector<8x1xf32> to vector<8x128xf32>
    %13 = arith.mulf %5, %12 : vector<8x128xf32>
    %c0_7 = arith.constant 0 : index
    %c0_8 = arith.constant 0 : index
    %14 = vector.load %arg4[%c0_7, %c0_8] : memref<8x128xf32, #tpu.memory_space<vmem>>, vector<8x128xf32>
    tpu.vector_store %arg4[%c0_7, %c0_8], %13 {strides = array<i32>} : memref<8x128xf32, #tpu.memory_space<vmem>>, vector<8x128xf32>,
    return
  }
  func.func @transform_0(%arg0: i32) -> (i32, i32) {
    %c0_i32 = arith.constant 0 : i32
    %c0_i32_0 = arith.constant 0 : i32
    return %arg0, %c0_i32 : i32, i32
  }
  func.func @transform_1(%arg0: i32) -> (i32, i32) {
    %c0_i32 = arith.constant 0 : i32
    %c0_i32_0 = arith.constant 0 : i32
    %c0_i32_1 = arith.constant 0 : i32
    return %c0_i32, %c0_i32_0 : i32, i32
  }
  func.func @transform_2(%arg0: i32) -> (i32, i32) {
    %c0_i32 = arith.constant 0 : i32
    %c0_i32_0 = arith.constant 0 : i32
    %c0_i32_1 = arith.constant 0 : i32
    return %c0_i32, %c0_i32_0 : i32, i32
  }
  func.func @transform_3(%arg0: i32) -> (i32, i32) {
    %c0_i32 = arith.constant 0 : i32
    %c0_i32_0 = arith.constant 0 : i32
    return %arg0, %c0_i32 : i32, i32
  }
}

</mosaic_0001>

<llo_original>
// kernel: tpu_custom_call.1
$region0: #{tpu_custom_call.1}
  #allocation0 [shape = 'u32[]', space=smem, size = 0x4, offset = 0x4, fixed_abs, tag = 'smem constant byte address 0x4 - core index']
  #allocation1 [shape = 'u32[144,128]{1,0:T(1,128)}', space=vmem, size = 0x12000, scoped, tag = 'internal scratch']
  %s0 = inlined_call_operand.hbm [shape: f32[8,32], index: 0, kind: input, shape index: {}]
  %s1 = inlined_call_operand.hbm [shape: f32[32,128], index: 1, kind: input, shape index: {}]
  %s2 = inlined_call_operand.vmem [shape: f32[1,128], index: 2, kind: input, shape index: {}]
  %s3 = inlined_call_operand.hbm [shape: f32[8,128], index: 3, kind: output, shape index: {}]
  %s4 = sld [smem:[#allocation0]]
  $region30: #{tpu_custom_call.1} parent=0
    _
  %s6 = ssub.s32 1, %s4
  %s7 = scalar_select 0, %s6, %s4
  $region1: #{tpu_custom_call.1} parent=0
    #allocation2 [shape = 'u8[4096]{0}', space=vmem, size = 0x1000, scoped, tag = 'input window, operand 0, single buffered']
    #allocation3 [shape = 's32[1]{0}', space=sflag, size = 0x4, scoped, tag = 'scoped memory for tpu_custom_call.1']
    #allocation4 [shape = 's32[1]{0}', space=sflag, size = 0x4, scoped, tag = 'scoped memory for tpu_custom_call.1']
    #allocation5 [shape = 'u8[16384]{0}', space=vmem, size = 0x4000, scoped, tag = 'input window, operand 1, single buffered']
    #allocation6 [shape = 's32[1]{0}', space=sflag, size = 0x4, scoped, tag = 'scoped memory for tpu_custom_call.1']
    #allocation7 [shape = 'u8[4096]{0}', space=vmem, size = 0x1000, scoped, tag = 'output window, operand 0, single buffered']
    %8 = vsyncpa [#allocation3], 0
    %9 = vsyncpa [#allocation6], 0
    %10 = vsyncpa [#allocation4], 0
    // Predicated region
    $region2: #{tpu_custom_call.1} parent=1 // pred_check
      _
    $region3: #{tpu_custom_call.1} parent=1 // pred_check_branch
      %12 = sbr.rel (0) target = $region5
    $region4: #{tpu_custom_call.1} parent=1 // pred_region
      %s14 = ssub.s32 128, 128
      %15 = vsyncadd [#allocation3], %s14
      %s17 = sshll.u32 [#allocation2], 4
      %s18 = int_to_ptr.vmem [resolvable:$true] %s17
      %20 = dma.hbm_to_vmem [thread:$0]  %s0, 128, %s18, [#allocation3]
    $region5: #{tpu_custom_call.1} parent=1 // pred_fallthru
      _
    // Predicated region
    $region6: #{tpu_custom_call.1} parent=1 // pred_check
      _
    $region7: #{tpu_custom_call.1} parent=1 // pred_check_branch
      %22 = sbr.rel (0) target = $region9
    $region8: #{tpu_custom_call.1} parent=1 // pred_region
      %s24 = ssub.s32 512, 512
      %25 = vsyncadd [#allocation6], %s24
      %s26 = sshll.u32 [#allocation5], 4
      %s27 = int_to_ptr.vmem [resolvable:$true] %s26
      %32 = dma.hbm_to_vmem [thread:$0]  %s1, 512, %s27, [#allocation6], 128, 128, 8
    $region9: #{tpu_custom_call.1} parent=1 // pred_fallthru
      _
    // Predicated region
    $region10: #{tpu_custom_call.1} parent=1 // pred_check
      _
    $region11: #{tpu_custom_call.1} parent=1 // pred_check_branch
      %34 = sbr.rel (0) target = $region13
    $region12: #{tpu_custom_call.1} parent=1 // pred_region
      _
    $region13: #{tpu_custom_call.1} parent=1 // pred_fallthru
      _
    // Predicated region
    $region14: #{tpu_custom_call.1} parent=1 // pred_check
      _
    $region15: #{tpu_custom_call.1} parent=1 // pred_check_branch
      %36 = sbr.rel (0) target = $region17
    $region16: #{tpu_custom_call.1} parent=1 // pred_region
      %37 = dma.done [#allocation3], 128
    $region17: #{tpu_custom_call.1} parent=1 // pred_fallthru
      _
    // Predicated region
    $region18: #{tpu_custom_call.1} parent=1 // pred_check
      _
    $region19: #{tpu_custom_call.1} parent=1 // pred_check_branch
      %39 = sbr.rel (0) target = $region21
    $region20: #{tpu_custom_call.1} parent=1 // pred_region
      %40 = dma.done [#allocation6], 512
    $region21: #{tpu_custom_call.1} parent=1 // pred_fallthru
      _
    %v41 = vld [vmem:[#allocation2] sm:$0xff]
    %v42 = vld [vmem:[#allocation5] sm:$0xff]
    %v43 = vld [vmem:[#allocation5 + $0x8] sm:$0xff]
    %v44 = vld [vmem:[#allocation5 + $0x10] sm:$0xff]
    %v45 = vld [vmem:[#allocation5 + $0x18] sm:$0xff]
    %v46 = vld [vmem:[%s2] sm:$0x1]
    %v48 = vlaneseq
    %v49 = vshrl.u32 %v48, 7
    %v50 = vsub.s32 0, %v49
    %v51 = vrot.slane %v46, %v50
    %vm53 = vcmask 261120
    %v55 = vsel %vm53, %v41, 0
    %57 = vmatprep.subr.mxu0 0.0
    %58 = vmatpush1.msra.mxu0 %v42
    %59 = vmatprep.subr.mxu0 0.0
    %60 = vmatpush1.msra.mxu0 %v43
    %61 = vmatprep.subr.mxu0 0.0
    %62 = vmatpush1.msra.mxu0 %v44
    %63 = vmatprep.subr.mxu0 0.0
    %64 = vmatpush1.msra.mxu0 %v45
    %65 = vmatprep.subr.mxu0 0.0
    %66 = vmatpush1.msra.mxu0 0.0
    %67 = vmatprep.subr.mxu0 0.0
    %68 = vmatpush1.msra.mxu0 0.0
    %69 = vmatprep.subr.mxu0 0.0
    %70 = vmatpush1.msra.mxu0 0.0
    %71 = vmatprep.subr.mxu0 0.0
    %72 = vmatpush1.msra.mxu0 0.0
    %73 = vmatprep.subr.mxu0 0.0
    %74 = vmatpush1.msra.mxu0 0.0
    %75 = vmatprep.subr.mxu0 0.0
    %76 = vmatpush1.msra.mxu0 0.0
    %77 = vmatprep.subr.mxu0 0.0
    %78 = vmatpush1.msra.mxu0 0.0
    %79 = vmatprep.subr.mxu0 0.0
    %80 = vmatpush1.msra.mxu0 0.0
    %81 = vmatprep.subr.mxu0 0.0
    %82 = vmatpush1.msra.mxu0 0.0
    %83 = vmatprep.subr.mxu0 0.0
    %84 = vmatpush1.msra.mxu0 0.0
    %85 = vmatprep.subr.mxu0 0.0
    %86 = vmatpush1.msra.mxu0 0.0
    %87 = vmatprep.subr.mxu0 0.0
    %88 = vmatpush1.msra.mxu0 0.0
    %89 = vmatprep.subr.mxu0 0.0
    %90 = vmatpush1.msra.mxu0 0.0
    %91 = vmatprep.subr.mxu0 0.0
    %92 = vmatpush1.msra.mxu0 0.0
    %93 = vmatprep.subr.mxu0 0.0
    %94 = vmatpush1.msra.mxu0 0.0
    %95 = vmatprep.subr.mxu0 0.0
    %96 = vmatpush1.msra.mxu0 0.0
    %97 = vmatprep.subr.mxu0 0.0
    %98 = vmatpush1.msra.mxu0 0.0
    %99 = vmatprep.subr.mxu0 0.0
    %100 = vmatpush1.msra.mxu0 0.0
    %101 = vmatprep.subr.mxu0 0.0
    %102 = vmatpush1.msra.mxu0 0.0
    %103 = vmatprep.subr.mxu0 0.0
    %104 = vmatpush1.msra.mxu0 0.0
    %105 = vmatprep.subr.mxu0 0.0
    %106 = vmatpush1.msra.mxu0 0.0
    %107 = vmatprep.subr.mxu0 0.0
    %108 = vmatpush1.msra.mxu0 0.0
    %109 = vmatprep.subr.mxu0 0.0
    %110 = vmatpush1.msra.mxu0 0.0
    %111 = vmatprep.subr.mxu0 0.0
    %112 = vmatpush1.msra.mxu0 0.0
    %113 = vmatprep.subr.mxu0 0.0
    %114 = vmatpush1.msra.mxu0 0.0
    %115 = vmatprep.subr.mxu0 0.0
    %116 = vmatpush1.msra.mxu0 0.0
    %117 = vmatprep.subr.mxu0 0.0
    %118 = vmatpush1.msra.mxu0 0.0
    %119 = vmatprep.subr.mxu0 0.0
    %120 = vmatpush1.msra.mxu0 0.0
    %121 = vmatprep.mubr.f32.mxu0 0.0
    %122 = vmatmul.mubr.f32.gmra.mrb[0].mxu0 %v55
    %v123 = vpop.f32.mrb[0].mxu0
    %v124 = vadd.f32 %v51, %v123
    %v125 = vpop.f32.mrb[0].mxu0
    %126 = vdwg.mxu0
    %v127 = vmul.f32 %v124, %v124
    %128 = vadd.xlane.f32.xlu0 %v127
    %v129 = vpop.xlane.xlu0 %128
    %v130 = vmax.f32 %v129, 1e-24
    %v131 = vrsqrt.pop %v130
    %v132 = vmul.f32 %v124, %v131
    %133 = vst [vmem:[#allocation7] sm:$0xff] %v132
    // Predicated region
    $region22: #{tpu_custom_call.1} parent=1 // pred_check
      _
    $region23: #{tpu_custom_call.1} parent=1 // pred_check_branch
      %135 = sbr.rel (0) target = $region25
    $region24: #{tpu_custom_call.1} parent=1 // pred_region
      %s137 = ssub.s32 128, 128
      %138 = vsyncadd [#allocation4], %s137
      %s140 = sshll.u32 [#allocation7], 4
      %s141 = int_to_ptr.vmem [resolvable:$true] %s140
      %143 = dma.vmem_to_hbm [thread:$0]  %s141, 128, %s3, [#allocation4]
    $region25: #{tpu_custom_call.1} parent=1 // pred_fallthru
      _
    // Predicated region
    $region26: #{tpu_custom_call.1} parent=1 // pred_check
      _
    $region27: #{tpu_custom_call.1} parent=1 // pred_check_branch
      %145 = sbr.rel (0) target = $region29
    $region28: #{tpu_custom_call.1} parent=1 // pred_region
      %146 = dma.done [#allocation4], 128
    $region29: #{tpu_custom_call.1} parent=1 // pred_fallthru
      _
    %147 = vsyncpa [#allocation3], 1
    %148 = vsyncpa [#allocation6], 1
    %149 = vsyncpa [#allocation4], 1

// kernel: tpu_custom_call.1
$region0: #{tpu_custom_call.1}
  #allocation0 [shape = 'u32[]', space=smem, size = 0x4, offset = 0x4, fixed_abs, tag = 'smem constant byte address 0x4 - core index']
  #allocation1 [shape = 'u32[144,128]{1,0:T(1,128)}', space=vmem, size = 0x12000, scoped, tag = 'internal scratch']
  %s0 = inlined_call_operand.hbm [shape: f32[8,32], index: 0, kind: input, shape index: {}]
  %s1 = inlined_call_operand.hbm [shape: f32[32,128], index: 1, kind: input, shape index: {}]
  %s2 = inlined_call_operand.vmem [shape: f32[1,128], index: 2, kind: input, shape index: {}]
  %s3 = inlined_call_operand.hbm [shape: f32[8,128], index: 3, kind: output, shape index: {}]
  %s4 = sld [smem:[#allocation0]]
  $region30: #{tpu_custom_call.1} parent=0
    _
  %s6 = ssub.s32 1, %s4
  %s7 = scalar_select 0, %s6, %s4
  $region1: #{tpu_custom_call.1} parent=0
    #allocation2 [shape = 'u8[4096]{0}', space=vmem, size = 0x1000, scoped, tag = 'input window, operand 0, single buffered']
    #allocation3 [shape = 's32[1]{0}', space=sflag, size = 0x4, scoped, tag = 'scoped memory for tpu_custom_call.1']
    #allocation4 [shape = 's32[1]{0}', space=sflag, size = 0x4, scoped, tag = 'scoped memory for tpu_custom_call.1']
    #allocation5 [shape = 'u8[16384]{0}', space=vmem, size = 0x4000, scoped, tag = 'input window, operand 1, single buffered']
    #allocation6 [shape = 's32[1]{0}', space=sflag, size = 0x4, scoped, tag = 'scoped memory for tpu_custom_call.1']
    #allocation7 [shape = 'u8[4096]{0}', space=vmem, size = 0x1000, scoped, tag = 'output window, operand 0, single buffered']
    %8 = vsyncpa [#allocation3], 0
    %9 = vsyncpa [#allocation6], 0
    %10 = vsyncpa [#allocation4], 0
    // Predicated region
    $region2: #{tpu_custom_call.1} parent=1 // pred_check
      _
    $region3: #{tpu_custom_call.1} parent=1 // pred_check_branch
      %12 = sbr.rel (0) target = $region5
    $region4: #{tpu_custom_call.1} parent=1 // pred_region
      %s14 = ssub.s32 128, 128
      %15 = vsyncadd [#allocation3], %s14
      %s17 = sshll.u32 [#allocation2], 4
      %s18 = int_to_ptr.vmem [resolvable:$true] %s17
      %20 = dma.hbm_to_vmem [thread:$0]  %s0, 128, %s18, [#allocation3]
    $region5: #{tpu_custom_call.1} parent=1 // pred_fallthru
      _
    // Predicated region
    $region6: #{tpu_custom_call.1} parent=1 // pred_check
      _
    $region7: #{tpu_custom_call.1} parent=1 // pred_check_branch
      %22 = sbr.rel (0) target = $region9
    $region8: #{tpu_custom_call.1} parent=1 // pred_region
      %s24 = ssub.s32 512, 512
      %25 = vsyncadd [#allocation6], %s24
      %s26 = sshll.u32 [#allocation5], 4
      %s27 = int_to_ptr.vmem [resolvable:$true] %s26
      %32 = dma.hbm_to_vmem [thread:$0]  %s1, 512, %s27, [#allocation6], 128, 128, 8
    $region9: #{tpu_custom_call.1} parent=1 // pred_fallthru
      _
    // Predicated region
    $region10: #{tpu_custom_call.1} parent=1 // pred_check
      _
    $region11: #{tpu_custom_call.1} parent=1 // pred_check_branch
      %34 = sbr.rel (0) target = $region13
    $region12: #{tpu_custom_call.1} parent=1 // pred_region
      _
    $region13: #{tpu_custom_call.1} parent=1 // pred_fallthru
      _
    // Predicated region
    $region14: #{tpu_custom_call.1} parent=1 // pred_check
      _
    $region15: #{tpu_custom_call.1} parent=1 // pred_check_branch
      %36 = sbr.rel (0) target = $region17
    $region16: #{tpu_custom_call.1} parent=1 // pred_region
      %37 = dma.done [#allocation3], 128
    $region17: #{tpu_custom_call.1} parent=1 // pred_fallthru
      _
    // Predicated region
    $region18: #{tpu_custom_call.1} parent=1 // pred_check
      _
    $region19: #{tpu_custom_call.1} parent=1 // pred_check_branch
      %39 = sbr.rel (0) target = $region21
    $region20: #{tpu_custom_call.1} parent=1 // pred_region
      %40 = dma.done [#allocation6], 512
    $region21: #{tpu_custom_call.1} parent=1 // pred_fallthru
      _
    %v41 = vld [vmem:[#allocation2] sm:$0xff]
    %v42 = vld [vmem:[#allocation5] sm:$0xff]
    %v43 = vld [vmem:[#allocation5 + $0x8] sm:$0xff]
    %v44 = vld [vmem:[#allocation5 + $0x10] sm:$0xff]
    %v45 = vld [vmem:[#allocation5 + $0x18] sm:$0xff]
    %v46 = vld [vmem:[%s2] sm:$0x1]
    %v48 = vlaneseq
    %v49 = vshrl.u32 %v48, 7
    %v50 = vsub.s32 0, %v49
    %v51 = vrot.slane %v46, %v50
    %vm53 = vcmask 261120
    %v55 = vsel %vm53, %v41, 0
    %57 = vmatprep.subr.mxu0 0.0
    %58 = vmatpush1.msra.mxu0 %v42
    %59 = vmatprep.subr.mxu0 0.0
    %60 = vmatpush1.msra.mxu0 %v43
    %61 = vmatprep.subr.mxu0 0.0
    %62 = vmatpush1.msra.mxu0 %v44
    %63 = vmatprep.subr.mxu0 0.0
    %64 = vmatpush1.msra.mxu0 %v45
    %65 = vmatprep.subr.mxu0 0.0
    %66 = vmatpush1.msra.mxu0 0.0
    %67 = vmatprep.subr.mxu0 0.0
    %68 = vmatpush1.msra.mxu0 0.0
    %69 = vmatprep.subr.mxu0 0.0
    %70 = vmatpush1.msra.mxu0 0.0
    %71 = vmatprep.subr.mxu0 0.0
    %72 = vmatpush1.msra.mxu0 0.0
    %73 = vmatprep.subr.mxu0 0.0
    %74 = vmatpush1.msra.mxu0 0.0
    %75 = vmatprep.subr.mxu0 0.0
    %76 = vmatpush1.msra.mxu0 0.0
    %77 = vmatprep.subr.mxu0 0.0
    %78 = vmatpush1.msra.mxu0 0.0
    %79 = vmatprep.subr.mxu0 0.0
    %80 = vmatpush1.msra.mxu0 0.0
    %81 = vmatprep.subr.mxu0 0.0
    %82 = vmatpush1.msra.mxu0 0.0
    %83 = vmatprep.subr.mxu0 0.0
    %84 = vmatpush1.msra.mxu0 0.0
    %85 = vmatprep.subr.mxu0 0.0
    %86 = vmatpush1.msra.mxu0 0.0
    %87 = vmatprep.subr.mxu0 0.0
    %88 = vmatpush1.msra.mxu0 0.0
    %89 = vmatprep.subr.mxu0 0.0
    %90 = vmatpush1.msra.mxu0 0.0
    %91 = vmatprep.subr.mxu0 0.0
    %92 = vmatpush1.msra.mxu0 0.0
    %93 = vmatprep.subr.mxu0 0.0
    %94 = vmatpush1.msra.mxu0 0.0
    %95 = vmatprep.subr.mxu0 0.0
    %96 = vmatpush1.msra.mxu0 0.0
    %97 = vmatprep.subr.mxu0 0.0
    %98 = vmatpush1.msra.mxu0 0.0
    %99 = vmatprep.subr.mxu0 0.0
    %100 = vmatpush1.msra.mxu0 0.0
    %101 = vmatprep.subr.mxu0 0.0
    %102 = vmatpush1.msra.mxu0 0.0
    %103 = vmatprep.subr.mxu0 0.0
    %104 = vmatpush1.msra.mxu0 0.0
    %105 = vmatprep.subr.mxu0 0.0
    %106 = vmatpush1.msra.mxu0 0.0
    %107 = vmatprep.subr.mxu0 0.0
    %108 = vmatpush1.msra.mxu0 0.0
    %109 = vmatprep.subr.mxu0 0.0
    %110 = vmatpush1.msra.mxu0 0.0
    %111 = vmatprep.subr.mxu0 0.0
    %112 = vmatpush1.msra.mxu0 0.0
    %113 = vmatprep.subr.mxu0 0.0
    %114 = vmatpush1.msra.mxu0 0.0
    %115 = vmatprep.subr.mxu0 0.0
    %116 = vmatpush1.msra.mxu0 0.0
    %117 = vmatprep.subr.mxu0 0.0
    %118 = vmatpush1.msra.mxu0 0.0
    %119 = vmatprep.subr.mxu0 0.0
    %120 = vmatpush1.msra.mxu0 0.0
    %121 = vmatprep.mubr.f32.mxu0 0.0
    %122 = vmatmul.mubr.f32.gmra.mrb[0].mxu0 %v55
    %v123 = vpop.f32.mrb[0].mxu0
    %v124 = vadd.f32 %v51, %v123
    %v125 = vpop.f32.mrb[0].mxu0
    %126 = vdwg.mxu0
    %v127 = vmul.f32 %v124, %v124
    %128 = vadd.xlane.f32.xlu0 %v127
    %v129 = vpop.xlane.xlu0 %128
    %v130 = vmax.f32 %v129, 1e-24
    %v131 = vrsqrt.pop %v130
    %v132 = vmul.f32 %v124, %v131
    %133 = vst [vmem:[#allocation7] sm:$0xff] %v132
    // Predicated region
    $region22: #{tpu_custom_call.1} parent=1 // pred_check
      _
    $region23: #{tpu_custom_call.1} parent=1 // pred_check_branch
      %135 = sbr.rel (0) target = $region25
    $region24: #{tpu_custom_call.1} parent=1 // pred_region
      %s137 = ssub.s32 128, 128
      %138 = vsyncadd [#allocation4], %s137
      %s140 = sshll.u32 [#allocation7], 4
      %s141 = int_to_ptr.vmem [resolvable:$true] %s140
      %143 = dma.vmem_to_hbm [thread:$0]  %s141, 128, %s3, [#allocation4]
    $region25: #{tpu_custom_call.1} parent=1 // pred_fallthru
      _
    // Predicated region
    $region26: #{tpu_custom_call.1} parent=1 // pred_check
      _
    $region27: #{tpu_custom_call.1} parent=1 // pred_check_branch
      %145 = sbr.rel (0) target = $region29
    $region28: #{tpu_custom_call.1} parent=1 // pred_region
      %146 = dma.done [#allocation4], 128
    $region29: #{tpu_custom_call.1} parent=1 // pred_fallthru
      _
    %147 = vsyncpa [#allocation3], 1
    %148 = vsyncpa [#allocation6], 1
    %149 = vsyncpa [#allocation4], 1

</llo_original>
